<compile_context>
chip_gen: v7x
topology: tpu7x:2x2x1
jax: 0.10.0
libtpu: 0.0.40
codegen_flags: <defaults>
</compile_context>

<pallas_src>
import math

import jax
import jax.numpy as jnp
from jax import lax
from jax.experimental import pallas as pl
from jax.experimental.pallas import tpu as pltpu

_TEMPERATURE = 0.2
_LANE = 128
_SUBLANE = 8


def _gg_loss_kernel(xn_ref, xat_ref, pos_ref, cmask_ref, loss_ref, rowsum_ref):
    """One (row_tile, col_tile) grid step of the graph-graph InfoNCE loss.

    Grid = (num_row_tiles, num_col_tiles); the column axis (j) is the reduction.
      xn_ref     : (tm, D) normalized, 1/sqrt(T)-scaled rows of x
      xat_ref    : (D, tn) normalized, 1/sqrt(T)-scaled x_aug, pre-transposed
                   (MXU-natural [K, N] layout -> no per-step RHS transpose)
      pos_ref    : (tm, 1) exp(<x_n_i, xa_n_i>) positives (precomputed)
      cmask_ref  : (tn, 1) 1.0 for real columns, 0.0 for padded columns
      loss_ref   : (tm, 1) per-row -log(pos / (rowsum - pos)); epilogue only
      rowsum_ref : (tm, 1) scratch: running sum_j cmask_j * exp(sim[i, j])
    """
    j = pl.program_id(1)

    @pl.when(j == 0)
    def _init():
        rowsum_ref[...] = jnp.zeros_like(rowsum_ref)

    # sim[i, j] = <x_i, xa_j> / (|x_i| |xa_j| T): normalization already folded
    # into the operands, so the step body is a single MXU matmul.
    sim = jnp.dot(xn_ref[...], xat_ref[...], preferred_element_type=jnp.float32)
    e = jnp.exp(sim)
    # Masked row-sum as a (tm, tn) @ (tn, 1) matmul: rides the (mostly idle)
    # MXU instead of the XLU lane-reduce, and drops padded columns in the
    # same op.
    rowsum_ref[...] += jnp.dot(e, cmask_ref[...],
                               preferred_element_type=jnp.float32)

    @pl.when(j == pl.num_programs(1) - 1)
    def _finalize():
        pos = pos_ref[...]
        neg = rowsum_ref[...] - pos
        # per-row loss: -log(pos / neg) = log(neg) - log(pos)
        loss_ref[...] = jnp.log(neg) - jnp.log(pos)


def _round_up(n, m):
    return ((n + m - 1) // m) * m


def _vmem_capacity_bytes():
    try:
        info = pltpu.get_tpu_info()
        return int(getattr(info, "vmem_capacity_bytes", 64 * 1024 * 1024))
    except Exception:
        return 64 * 1024 * 1024  # conservative default (v7x: 64 MiB / TC)


def _est_vmem_bytes(tm, tn, D, mm_itemsize):
    xin = 2 * tm * D * mm_itemsize        # x_n row block, double-buffered
    xat = 2 * D * tn * mm_itemsize        # x_aug_n^T column block, double-buffered
    small = 2 * (tm + tn + tm) * 4        # pos / cmask / loss blocks
    acc = tm * 4                          # rowsum scratch
    tmp = 3 * tm * tn * 4                 # sim / exp / masked-sum temporaries
    return xin + xat + small + acc + tmp


def _choose_tiles(B, D, mm_itemsize, budget_bytes, row_tile, col_tile):
    """Pick padded batch and (tm, tn).  tn is the lane dim of the transposed
    x_aug block, so it must be a multiple of 128 or equal the padded batch."""
    if row_tile is not None or col_tile is not None:
        tm = int(row_tile) if row_tile is not None else 128
        tn = int(col_tile) if col_tile is not None else 128
        l = tm * tn // math.gcd(tm, tn)
        b_pad = _round_up(B, l)
        assert tm % _SUBLANE == 0, "row_tile must be a multiple of 8"
        assert tn % _LANE == 0 or tn == b_pad, (
            "col_tile must be a multiple of 128 or equal the padded batch")
        return b_pad, tm, tn

    if B <= 256:
        # Single-step regime: no 128-padding, one grid cell.
        b_pad = _round_up(max(B, 1), _SUBLANE)
        return b_pad, b_pad, b_pad

    b_pad = _round_up(B, _LANE)
    tn = 256 if b_pad % 256 == 0 else 128
    tm = 128
    for cand in (1024, 512, 256):
        if b_pad % cand != 0:
            continue
        if b_pad // cand < 2:   # keep >= 2 row tiles so both v7x TCs get work
            continue
        if _est_vmem_bytes(cand, tn, D, mm_itemsize) <= budget_bytes:
            tm = cand
            break
    while tn > 128 and _est_vmem_bytes(tm, tn, D, mm_itemsize) > budget_bytes:
        tn //= 2
    # TODO(synk): tile the feature dim (K reduction) for very large D that does
    # not fit VMEM even at tm = tn = 128.
    return b_pad, tm, tn


def graph_graph_contrastive_loss(x, x_aug, *, row_tile=None, col_tile=None,
                                 matmul_dtype=None):
    """Graph-graph InfoNCE loss. x, x_aug: (B, D) arrays. Returns scalar f32."""
    B, D = x.shape
    assert x_aug.shape == (B, D)
    inv_sqrt_t = 1.0 / math.sqrt(_TEMPERATURE)

    # bf16 MXU operands when the inputs are bf16 (v6e/v7x fast path); pass
    # matmul_dtype=jnp.bfloat16 explicitly to force it for f32 inputs.
    if matmul_dtype is None:
        matmul_dtype = jnp.bfloat16 if x.dtype == jnp.bfloat16 else jnp.float32
    mm_itemsize = jnp.dtype(matmul_dtype).itemsize

    vmem_cap = _vmem_capacity_bytes()
    vmem_limit = max(32 * 1024 * 1024, min(int(0.75 * vmem_cap), 96 * 1024 * 1024))
    budget = int(0.6 * vmem_limit)

    b_pad, tm, tn = _choose_tiles(B, D, mm_itemsize, budget, row_tile, col_tile)

    # --- O(B*D) prep in the wrapper (fused by XLA, negligible vs the B^2 work):
    # fold 1/||row|| and 1/sqrt(T) into both operands, pre-transpose x_aug to
    # [K, N], and compute positives once (no duplicate x_aug row stream).
    xf = x.astype(jnp.float32)
    xaf = x_aug.astype(jnp.float32)
    x_n = xf * (lax.rsqrt(jnp.sum(xf * xf, axis=1, keepdims=True)) * inv_sqrt_t)
    xa_n = xaf * (lax.rsqrt(jnp.sum(xaf * xaf, axis=1, keepdims=True)) * inv_sqrt_t)

    x_mm = x_n.astype(matmul_dtype)
    xa_mm = xa_n.astype(matmul_dtype)
    # Positives from the same (possibly bf16-rounded) operands that feed the
    # MXU, keeping pos consistent with the matching rowsum term.
    pos = jnp.exp(jnp.sum(x_mm.astype(jnp.float32) * xa_mm.astype(jnp.float32),
                          axis=1, keepdims=True))
    xat_mm = xa_mm.T                      # (D, B)

    if b_pad != B:
        pad = b_pad - B
        # Zero rows/cols AFTER normalization: padded sims are exactly 0 ->
        # exp = 1; padded columns are masked out of the row-sum and padded
        # rows are dropped from the mean below.
        x_mm = jnp.pad(x_mm, ((0, pad), (0, 0)))
        xat_mm = jnp.pad(xat_mm, ((0, 0), (0, pad)))
        pos = jnp.pad(pos, ((0, pad), (0, 0)), constant_values=1.0)
    cmask = (jnp.arange(b_pad) < B).astype(jnp.float32).reshape(b_pad, 1)

    grid = (b_pad // tm, b_pad // tn)
    cost = pl.CostEstimate(
        flops=2 * b_pad * b_pad * D + 2 * b_pad * b_pad,
        transcendentals=b_pad * b_pad,
        bytes_accessed=(b_pad * D * mm_itemsize
                        + grid[0] * b_pad * D * mm_itemsize
                        + 3 * b_pad * 4))

    per_row = pl.pallas_call(
        _gg_loss_kernel,
        out_shape=jax.ShapeDtypeStruct((b_pad, 1), jnp.float32),
        grid_spec=pltpu.PrefetchScalarGridSpec(
            num_scalar_prefetch=0,
            grid=grid,
            in_specs=[
                pl.BlockSpec((tm, D), lambda i, j: (i, 0)),   # x_n rows
                pl.BlockSpec((D, tn), lambda i, j: (0, j)),   # x_aug_n^T cols
                pl.BlockSpec((tm, 1), lambda i, j: (i, 0)),   # positives
                pl.BlockSpec((tn, 1), lambda i, j: (j, 0)),   # column mask
            ],
            out_specs=pl.BlockSpec((tm, 1), lambda i, j: (i, 0)),
            scratch_shapes=[pltpu.VMEM((tm, 1), jnp.float32)],
        ),
        compiler_params=pltpu.CompilerParams(
            dimension_semantics=("parallel", "arbitrary"),
            vmem_limit_bytes=vmem_limit),
        cost_estimate=cost,
    )(x_mm, xat_mm, pos, cmask)

    # Tiny O(B) reduction outside the kernel so the row axis stays "parallel"
    # (megacore-shardable) with no cross-tile race; padded rows are dropped.
    return jnp.mean(per_row[:B, 0])


def _reference_loss(x, x_aug):
    # Pure-JAX mirror of the PyTorch forward, for a sanity check.
    T = _TEMPERATURE
    x = x.astype(jnp.float32)
    x_aug = x_aug.astype(jnp.float32)
    x_abs = jnp.linalg.norm(x, axis=1)
    xa_abs = jnp.linalg.norm(x_aug, axis=1)
    sim = jnp.einsum("ik,jk->ij", x, x_aug) / jnp.einsum("i,j->ij", x_abs, xa_abs)
    sim = jnp.exp(sim / T)
    pos = jnp.diagonal(sim)
    loss = pos / (jnp.sum(sim, axis=1) - pos)
    return -jnp.mean(jnp.log(loss))


if __name__ == "__main__":
    key = jax.random.PRNGKey(0)
    k1, k2, k3, k4, k5, k6, k7, k8 = jax.random.split(key, 8)

    # Case 1: small (batch, hidden) inputs consistent with the module.
    B, D = 8, 32
    x = jax.random.normal(k1, (B, D), dtype=jnp.float32)
    x_aug = jax.random.normal(k2, (B, D), dtype=jnp.float32)
    loss = graph_graph_contrastive_loss(x, x_aug)
    jax.block_until_ready(loss)
    ref = _reference_loss(x, x_aug)
    assert jnp.allclose(loss, ref, rtol=1e-4, atol=1e-4), (loss, ref)

    # Case 2: batch not a multiple of the sublane -> pad + column-mask path.
    B2, D2 = 13, 32
    x2 = jax.random.normal(k3, (B2, D2), dtype=jnp.float32)
    x2_aug = jax.random.normal(k4, (B2, D2), dtype=jnp.float32)
    loss2 = graph_graph_contrastive_loss(x2, x2_aug)
    jax.block_until_ready(loss2)
    ref2 = _reference_loss(x2, x2_aug)
    assert jnp.allclose(loss2, ref2, rtol=1e-4, atol=1e-4), (loss2, ref2)

    # Case 3: multi-tile grid -> exercises the online accumulation over j.
    B3, D3 = 256, 128
    x3 = jax.random.normal(k5, (B3, D3), dtype=jnp.float32)
    x3_aug = jax.random.normal(k6, (B3, D3), dtype=jnp.float32)
    loss3 = graph_graph_contrastive_loss(x3, x3_aug, row_tile=128, col_tile=128)
    jax.block_until_ready(loss3)
    ref3 = _reference_loss(x3, x3_aug)
    assert jnp.allclose(loss3, ref3, rtol=1e-3, atol=1e-3), (loss3, ref3)

    # Case 4: bf16 inputs -> bf16 MXU operands (v6e/v7x fast matmul path).
    B4, D4 = 64, 128
    x4 = jax.random.normal(k7, (B4, D4), dtype=jnp.float32)
    x4_aug = jax.random.normal(k8, (B4, D4), dtype=jnp.float32)
    loss4 = graph_graph_contrastive_loss(x4.astype(jnp.bfloat16),
                                         x4_aug.astype(jnp.bfloat16))
    jax.block_until_ready(loss4)
    ref4 = _reference_loss(x4, x4_aug)
    assert bool(jnp.isfinite(loss4)), loss4
    assert abs(float(loss4) - float(ref4)) < 6e-2, (loss4, ref4)

    print("KERNEL_OK")
</pallas_src>

<mosaic_0001>
module attributes {stable_mosaic.version = 11 : i64} {
  func.func @_gg_loss_kernel(%arg0: i32, %arg1: i32, %arg2: memref<8x32xf32, #tpu.memory_space<vmem>>, %arg3: memref<32x8xf32, #tpu.memory_space<vmem>>, %arg4: memref<8x1xf32, #tpu.memory_space<vmem>>, %arg5: memref<8x1xf32, #tpu.memory_space<vmem>>, %arg6: memref<8x1xf32, #tpu.memory_space<vmem>>, %arg7: memref<8x1xf32, #tpu.memory_space<vmem>>) attributes {dimension_semantics = [#tpu.dimension_semantics<parallel>, #tpu.dimension_semantics<arbitrary>], iteration_bounds = array<i64: 1, 1>, scalar_prefetch = 0 : i64, scratch_operands = 1 : i64, tpu.core_type = #tpu.core_type<tc>, window_params = [{transform_indices = @transform_0, window_bounds = array<i64: 8, 32>}, {transform_indices = @transform_1, window_bounds = array<i64: 32, 8>}, {transform_indices = @transform_2, window_bounds = array<i64: 8, 1>}, {transform_indices = @transform_3, window_bounds = array<i64: 8, 1>}, {transform_indices = @transform_4, window_bounds = array<i64: 8, 1>}]} {
    %c0_i32 = arith.constant 0 : i32
    %0 = arith.cmpi eq, %arg1, %c0_i32 : i32
    %1 = arith.extui %0 : i1 to i32
    %c0_i32_0 = arith.constant 0 : i32
    %2 = arith.cmpi ne, %1, %c0_i32_0 : i32
    scf.if %2 {
      %cst_13 = arith.constant 0.000000e+00 : f32
      %15 = vector.broadcast %cst_13 : f32 to vector<8x1xf32>
      %c0_14 = arith.constant 0 : index
      %c0_15 = arith.constant 0 : index
      %16 = vector.load %arg7[%c0_14, %c0_15] : memref<8x1xf32, #tpu.memory_space<vmem>>, vector<8x1xf32>
      tpu.vector_store %arg7[%c0_14, %c0_15], %15 {strides = array<i32>} : memref<8x1xf32, #tpu.memory_space<vmem>>, vector<8x1xf32>,
    } else {
    }
    %c0 = arith.constant 0 : index
    %c0_1 = arith.constant 0 : index
    %3 = vector.load %arg2[%c0, %c0_1] : memref<8x32xf32, #tpu.memory_space<vmem>>, vector<8x32xf32>
    %c0_2 = arith.constant 0 : index
    %c0_3 = arith.constant 0 : index
    %4 = vector.load %arg3[%c0_2, %c0_3] : memref<32x8xf32, #tpu.memory_space<vmem>>, vector<32x8xf32>
    %cst = arith.constant dense<0.000000e+00> : vector<8x8xf32>
    %5 = tpu.matmul %3, %4, %cst {dimension_numbers = #tpu.dot_dimension_numbers<[1], [0], [0], [1], [0, 0, 1, 1], [], []>} : vector<8x32xf32>, vector<32x8xf32>, vector<8x8xf32> -> vector<8x8xf32>
    %6 = math.exp %5 : vector<8x8xf32>
    %c0_4 = arith.constant 0 : index
    %c0_5 = arith.constant 0 : index
    %7 = vector.load %arg7[%c0_4, %c0_5] : memref<8x1xf32, #tpu.memory_space<vmem>>, vector<8x1xf32>
    %c0_6 = arith.constant 0 : index
    %c0_7 = arith.constant 0 : index
    %8 = vector.load %arg5[%c0_6, %c0_7] : memref<8x1xf32, #tpu.memory_space<vmem>>, vector<8x1xf32>
    %cst_8 = arith.constant dense<0.000000e+00> : vector<8x1xf32>
    %9 = tpu.matmul %6, %8, %cst_8 {dimension_numbers = #tpu.dot_dimension_numbers<[1], [0], [0], [1], [0, 0, 1, 1], [], []>} : vector<8x8xf32>, vector<8x1xf32>, vector<8x1xf32> -> vector<8x1xf32>
    %10 = arith.addf %7, %9 : vector<8x1xf32>
    %c0_9 = arith.constant 0 : index
    %c0_10 = arith.constant 0 : index
    %11 = vector.load %arg7[%c0_9, %c0_10] : memref<8x1xf32, #tpu.memory_space<vmem>>, vector<8x1xf32>
    tpu.vector_store %arg7[%c0_9, %c0_10], %10 {strides = array<i32>} : memref<8x1xf32, #tpu.memory_space<vmem>>, vector<8x1xf32>,
    %c0_i32_11 = arith.constant 0 : i32
    %12 = arith.cmpi eq, %arg1, %c0_i32_11 : i32
    %13 = arith.extui %12 : i1 to i32
    %c0_i32_12 = arith.constant 0 : i32
    %14 = arith.cmpi ne, %13, %c0_i32_12 : i32
    scf.if %14 {
      %c0_13 = arith.constant 0 : index
      %c0_14 = arith.constant 0 : index
      %15 = vector.load %arg4[%c0_13, %c0_14] : memref<8x1xf32, #tpu.memory_space<vmem>>, vector<8x1xf32>
      %c0_15 = arith.constant 0 : index
      %c0_16 = arith.constant 0 : index
      %16 = vector.load %arg7[%c0_15, %c0_16] : memref<8x1xf32, #tpu.memory_space<vmem>>, vector<8x1xf32>
      %17 = arith.subf %16, %15 : vector<8x1xf32>
      %18 = math.log %17 : vector<8x1xf32>
      %19 = math.log %15 : vector<8x1xf32>
      %20 = arith.subf %18, %19 : vector<8x1xf32>
      %c0_17 = arith.constant 0 : index
      %c0_18 = arith.constant 0 : index
      %21 = vector.load %arg6[%c0_17, %c0_18] : memref<8x1xf32, #tpu.memory_space<vmem>>, vector<8x1xf32>
      tpu.vector_store %arg6[%c0_17, %c0_18], %20 {strides = array<i32>} : memref<8x1xf32, #tpu.memory_space<vmem>>, vector<8x1xf32>,
    } else {
    }
    return
  }
  func.func @transform_0(%arg0: i32, %arg1: i32) -> (i32, i32) {
    %c0_i32 = arith.constant 0 : i32
    %c0_i32_0 = arith.constant 0 : i32
    return %arg0, %c0_i32 : i32, i32
  }
  func.func @transform_1(%arg0: i32, %arg1: i32) -> (i32, i32) {
    %c0_i32 = arith.constant 0 : i32
    %c0_i32_0 = arith.constant 0 : i32
    return %c0_i32, %arg1 : i32, i32
  }
  func.func @transform_2(%arg0: i32, %arg1: i32) -> (i32, i32) {
    %c0_i32 = arith.constant 0 : i32
    %c0_i32_0 = arith.constant 0 : i32
    return %arg0, %c0_i32 : i32, i32
  }
  func.func @transform_3(%arg0: i32, %arg1: i32) -> (i32, i32) {
    %c0_i32 = arith.constant 0 : i32
    %c0_i32_0 = arith.constant 0 : i32
    return %arg1, %c0_i32 : i32, i32
  }
  func.func @transform_4(%arg0: i32, %arg1: i32) -> (i32, i32) {
    %c0_i32 = arith.constant 0 : i32
    %c0_i32_0 = arith.constant 0 : i32
    return %arg0, %c0_i32 : i32, i32
  }
}

</mosaic_0001>

<llo_original>
// kernel: tpu_custom_call.1
$region0: #{tpu_custom_call.1}
  #allocation0 [shape = 'u32[]', space=smem, size = 0x4, offset = 0x4, fixed_abs, tag = 'smem constant byte address 0x4 - core index']
  #allocation1 [shape = 'u32[144,128]{1,0:T(1,128)}', space=vmem, size = 0x12000, scoped, tag = 'internal scratch']
  #allocation2 [shape = 'f32[8,1]{1,0:T(8,128)}', space=vmem, size = 0x1000, scoped, tag = 'scratch operand']
  %s0 = inlined_call_operand.vmem [shape: f32[8,32], index: 0, kind: input, shape index: {}]
  %s1 = inlined_call_operand.vmem [shape: f32[32,8], index: 1, kind: input, shape index: {}]
  %s2 = inlined_call_operand.vmem [shape: f32[8,1], index: 2, kind: input, shape index: {}]
  %s3 = inlined_call_operand.vmem [shape: f32[8,1], index: 3, kind: input, shape index: {}]
  %s4 = inlined_call_operand.vmem [shape: f32[8,1], index: 4, kind: output, shape index: {}]
  %s5 = sld [smem:[#allocation0]]
  $region34: #{tpu_custom_call.1} parent=0
    _
  %s7 = ssub.s32 1, %s5
  %s8 = scalar_select 0, %s7, %s5
  // Predicated region
  $region2: #{tpu_custom_call.1} parent=0 // pred_check
    _
  $region3: #{tpu_custom_call.1} parent=0 // pred_check_branch
    %10 = sbr.rel (0) target = $region5
  $region4: #{tpu_custom_call.1} parent=0 // pred_region
    _
  $region5: #{tpu_custom_call.1} parent=0 // pred_fallthru
    _
  // Predicated region
  $region6: #{tpu_custom_call.1} parent=0 // pred_check
    _
  $region7: #{tpu_custom_call.1} parent=0 // pred_check_branch
    %12 = sbr.rel (0) target = $region9
  $region8: #{tpu_custom_call.1} parent=0 // pred_region
    _
  $region9: #{tpu_custom_call.1} parent=0 // pred_fallthru
    _
  // Predicated region
  $region10: #{tpu_custom_call.1} parent=0 // pred_check
    _
  $region11: #{tpu_custom_call.1} parent=0 // pred_check_branch
    %14 = sbr.rel (0) target = $region13
  $region12: #{tpu_custom_call.1} parent=0 // pred_region
    _
  $region13: #{tpu_custom_call.1} parent=0 // pred_fallthru
    _
  // Predicated region
  $region14: #{tpu_custom_call.1} parent=0 // pred_check
    _
  $region15: #{tpu_custom_call.1} parent=0 // pred_check_branch
    %16 = sbr.rel (0) target = $region17
  $region16: #{tpu_custom_call.1} parent=0 // pred_region
    _
  $region17: #{tpu_custom_call.1} parent=0 // pred_fallthru
    _
  %p17 = scmp.eq.s32.totalorder 0, 0
  // Predicated region
  $region18: #{tpu_custom_call.1} parent=0 // pred_check
    %p18 = pneg %p17
  $region19: #{tpu_custom_call.1} parent=0 // pred_check_branch
    %20 = sbr.rel (%p18) target = $region21
  $region20: #{tpu_custom_call.1} parent=0 // pred_region
    %vm21 = vcmask 7168
    %22 = vst.msk [vmem:[#allocation2] sm:$0xff] %vm21, 0.0
  $region21: #{tpu_custom_call.1} parent=0 // pred_fallthru
    _
  %v23 = vld [vmem:[%s0] sm:$0xff]
  %v24 = vld [vmem:[%s1] sm:$0xff]
  %v25 = vld [vmem:[%s1 + $0x8] sm:$0xff]
  %v26 = vld [vmem:[%s1 + $0x10] sm:$0xff]
  %v27 = vld [vmem:[%s1 + $0x18] sm:$0xff]
  %vm28 = vcmask 261120
  %v30 = vsel %vm28, %v23, 0
  %32 = vmatprep.subr.mxu0 0.0
  %33 = vmatpush1.msra.mxu0 %v24
  %34 = vmatprep.subr.mxu0 0.0
  %35 = vmatpush1.msra.mxu0 %v25
  %36 = vmatprep.subr.mxu0 0.0
  %37 = vmatpush1.msra.mxu0 %v26
  %38 = vmatprep.subr.mxu0 0.0
  %39 = vmatpush1.msra.mxu0 %v27
  %40 = vmatprep.subr.mxu0 0.0
  %41 = vmatpush1.msra.mxu0 0.0
  %42 = vmatprep.subr.mxu0 0.0
  %43 = vmatpush1.msra.mxu0 0.0
  %44 = vmatprep.subr.mxu0 0.0
  %45 = vmatpush1.msra.mxu0 0.0
  %46 = vmatprep.subr.mxu0 0.0
  %47 = vmatpush1.msra.mxu0 0.0
  %48 = vmatprep.subr.mxu0 0.0
  %49 = vmatpush1.msra.mxu0 0.0
  %50 = vmatprep.subr.mxu0 0.0
  %51 = vmatpush1.msra.mxu0 0.0
  %52 = vmatprep.subr.mxu0 0.0
  %53 = vmatpush1.msra.mxu0 0.0
  %54 = vmatprep.subr.mxu0 0.0
  %55 = vmatpush1.msra.mxu0 0.0
  %56 = vmatprep.subr.mxu0 0.0
  %57 = vmatpush1.msra.mxu0 0.0
  %58 = vmatprep.subr.mxu0 0.0
  %59 = vmatpush1.msra.mxu0 0.0
  %60 = vmatprep.subr.mxu0 0.0
  %61 = vmatpush1.msra.mxu0 0.0
  %62 = vmatprep.subr.mxu0 0.0
  %63 = vmatpush1.msra.mxu0 0.0
  %64 = vmatprep.subr.mxu0 0.0
  %65 = vmatpush1.msra.mxu0 0.0
  %66 = vmatprep.subr.mxu0 0.0
  %67 = vmatpush1.msra.mxu0 0.0
  %68 = vmatprep.subr.mxu0 0.0
  %69 = vmatpush1.msra.mxu0 0.0
  %70 = vmatprep.subr.mxu0 0.0
  %71 = vmatpush1.msra.mxu0 0.0
  %72 = vmatprep.subr.mxu0 0.0
  %73 = vmatpush1.msra.mxu0 0.0
  %74 = vmatprep.subr.mxu0 0.0
  %75 = vmatpush1.msra.mxu0 0.0
  %76 = vmatprep.subr.mxu0 0.0
  %77 = vmatpush1.msra.mxu0 0.0
  %78 = vmatprep.subr.mxu0 0.0
  %79 = vmatpush1.msra.mxu0 0.0
  %80 = vmatprep.subr.mxu0 0.0
  %81 = vmatpush1.msra.mxu0 0.0
  %82 = vmatprep.subr.mxu0 0.0
  %83 = vmatpush1.msra.mxu0 0.0
  %84 = vmatprep.subr.mxu0 0.0
  %85 = vmatpush1.msra.mxu0 0.0
  %86 = vmatprep.subr.mxu0 0.0
  %87 = vmatpush1.msra.mxu0 0.0
  %88 = vmatprep.subr.mxu0 0.0
  %89 = vmatpush1.msra.mxu0 0.0
  %90 = vmatprep.subr.mxu0 0.0
  %91 = vmatpush1.msra.mxu0 0.0
  %92 = vmatprep.subr.mxu0 0.0
  %93 = vmatpush1.msra.mxu0 0.0
  %94 = vmatprep.subr.mxu0 0.0
  %95 = vmatpush1.msra.mxu0 0.0
  %96 = vmatprep.mubr.f32.mxu0 0.0
  %97 = vmatmul.mubr.f32.gmra.mrb[0].mxu0 %v30
  %v98 = vpop.f32.mrb[0].mxu0
  %v99 = vadd.f32 0.0, %v98
  %v100 = vpop.f32.mrb[0].mxu0
  %101 = vdwg.mxu0
  %v102 = vmul.f32 %v99, 1.442695
  %v103 = vpow.pop %v102
  %v104 = vld [vmem:[#allocation2] sm:$0xff]
  %v105 = vld [vmem:[%s3] sm:$0xff]
  %vm106 = vcmask 64512
  %v108 = vsel %vm106, %v103, 0
  %110 = vmatprep.subr.mxu0 0.0
  %111 = vmatpush1.msra.mxu0 %v105
  %112 = vmatprep.subr.mxu0 0.0
  %113 = vmatpush1.msra.mxu0 0.0
  %114 = vmatprep.subr.mxu0 0.0
  %115 = vmatpush1.msra.mxu0 0.0
  %116 = vmatprep.subr.mxu0 0.0
  %117 = vmatpush1.msra.mxu0 0.0
  %118 = vmatprep.subr.mxu0 0.0
  %119 = vmatpush1.msra.mxu0 0.0
  %120 = vmatprep.subr.mxu0 0.0
  %121 = vmatpush1.msra.mxu0 0.0
  %122 = vmatprep.subr.mxu0 0.0
  %123 = vmatpush1.msra.mxu0 0.0
  %124 = vmatprep.subr.mxu0 0.0
  %125 = vmatpush1.msra.mxu0 0.0
  %126 = vmatprep.subr.mxu0 0.0
  %127 = vmatpush1.msra.mxu0 0.0
  %128 = vmatprep.subr.mxu0 0.0
  %129 = vmatpush1.msra.mxu0 0.0
  %130 = vmatprep.subr.mxu0 0.0
  %131 = vmatpush1.msra.mxu0 0.0
  %132 = vmatprep.subr.mxu0 0.0
  %133 = vmatpush1.msra.mxu0 0.0
  %134 = vmatprep.subr.mxu0 0.0
  %135 = vmatpush1.msra.mxu0 0.0
  %136 = vmatprep.subr.mxu0 0.0
  %137 = vmatpush1.msra.mxu0 0.0
  %138 = vmatprep.subr.mxu0 0.0
  %139 = vmatpush1.msra.mxu0 0.0
  %140 = vmatprep.subr.mxu0 0.0
  %141 = vmatpush1.msra.mxu0 0.0
  %142 = vmatprep.subr.mxu0 0.0
  %143 = vmatpush1.msra.mxu0 0.0
  %144 = vmatprep.subr.mxu0 0.0
  %145 = vmatpush1.msra.mxu0 0.0
  %146 = vmatprep.subr.mxu0 0.0
  %147 = vmatpush1.msra.mxu0 0.0
  %148 = vmatprep.subr.mxu0 0.0
  %149 = vmatpush1.msra.mxu0 0.0
  %150 = vmatprep.subr.mxu0 0.0
  %151 = vmatpush1.msra.mxu0 0.0
  %152 = vmatprep.subr.mxu0 0.0
  %153 = vmatpush1.msra.mxu0 0.0
  %154 = vmatprep.subr.mxu0 0.0
  %155 = vmatpush1.msra.mxu0 0.0
  %156 = vmatprep.subr.mxu0 0.0
  %157 = vmatpush1.msra.mxu0 0.0
  %158 = vmatprep.subr.mxu0 0.0
  %159 = vmatpush1.msra.mxu0 0.0
  %160 = vmatprep.subr.mxu0 0.0
  %161 = vmatpush1.msra.mxu0 0.0
  %162 = vmatprep.subr.mxu0 0.0
  %163 = vmatpush1.msra.mxu0 0.0
  %164 = vmatprep.subr.mxu0 0.0
  %165 = vmatpush1.msra.mxu0 0.0
  %166 = vmatprep.subr.mxu0 0.0
  %167 = vmatpush1.msra.mxu0 0.0
  %168 = vmatprep.subr.mxu0 0.0
  %169 = vmatpush1.msra.mxu0 0.0
  %170 = vmatprep.subr.mxu0 0.0
  %171 = vmatpush1.msra.mxu0 0.0
  %172 = vmatprep.subr.mxu0 0.0
  %173 = vmatpush1.msra.mxu0 0.0
  %174 = vmatprep.mubr.f32.mxu0 0.0
  %175 = vmatmul.mubr.f32.gmra.mrb[0].mxu0 %v108
  %v176 = vpop.f32.mrb[0].mxu0
  %v177 = vadd.f32 0.0, %v176
  %v178 = vpop.f32.mrb[0].mxu0
  %179 = vdwg.mxu0
  %v180 = vadd.f32 %v104, %v177
  %vm181 = vcmask 7168
  %182 = vst.msk [vmem:[#allocation2] sm:$0xff] %vm181, %v180
  // Predicated region
  $region22: #{tpu_custom_call.1} parent=0 // pred_check
    %p183 = pneg %p17
  $region23: #{tpu_custom_call.1} parent=0 // pred_check_branch
    %185 = sbr.rel (%p183) target = $region25
  $region24: #{tpu_custom_call.1} parent=0 // pred_region
    %v186 = vld [vmem:[%s2] sm:$0xff]
    %v187 = vld [vmem:[#allocation2] sm:$0xff]
    %v188 = vsub.f32 %v187, %v186
    %v189 = vlog2.pop %v188
    %v190 = vmul.f32 %v189, 0.6931472
    %v191 = vlog2.pop %v186
    %v192 = vmul.f32 %v191, 0.6931472
    %v193 = vsub.f32 %v190, %v192
    %194 = vst.msk [vmem:[%s4] sm:$0xff] %vm181, %v193
  $region25: #{tpu_custom_call.1} parent=0 // pred_fallthru
    _
  // Predicated region
  $region26: #{tpu_custom_call.1} parent=0 // pred_check
    _
  $region27: #{tpu_custom_call.1} parent=0 // pred_check_branch
    %196 = sbr.rel (0) target = $region29
  $region28: #{tpu_custom_call.1} parent=0 // pred_region
    _
  $region29: #{tpu_custom_call.1} parent=0 // pred_fallthru
    _
  // Predicated region
  $region30: #{tpu_custom_call.1} parent=0 // pred_check
    _
  $region31: #{tpu_custom_call.1} parent=0 // pred_check_branch
    %198 = sbr.rel (0) target = $region33
  $region32: #{tpu_custom_call.1} parent=0 // pred_region
    _
  $region33: #{tpu_custom_call.1} parent=0 // pred_fallthru
    _

</llo_original>
